<compile_context>
chip_gen: v6e
topology: v6e:2x2x1
jax: 0.10.0
libtpu: 0.0.40
codegen_flags: <defaults>
</compile_context>

<pallas_src>
import functools

import jax
import jax.numpy as jnp
from jax.experimental import pallas as pl
from jax.experimental.pallas import tpu as pltpu


def _round_up(x, m):
    return ((x + m - 1) // m) * m


def _vmem_budget_bytes():
    """Generation-aware scoped-VMEM budget (leave headroom for Mosaic scratch)."""
    cap = 64 * 1024 * 1024  # conservative default = v7x per-TC VMEM
    try:
        cap = int(pltpu.get_tpu_info().vmem_capacity_bytes)
    except Exception:
        pass
    return max(16 * 1024 * 1024, min(int(cap * 0.65), 100 * 1024 * 1024))


def _pick_tile_n(n1, ns, cin, co_pad, in_itemsize, out_itemsize, budget):
    """Largest query-point tile (multiple of 128) whose per-step VMEM fits the budget."""
    cin_vmem = _round_up(cin, 128)  # VMEM lane padding of the channels-last input

    def est(t):
        return (2 * ns * t * cin_vmem * in_itemsize      # double-buffered input tile
                + 2 * t * co_pad * 4                      # running max + chunk (f32)
                + 2 * co_pad * t * out_itemsize           # double-buffered output tile
                + 4 * cin_vmem * co_pad * in_itemsize     # Wmain, Wcent
                + 2 * co_pad * 4)                         # bias

    tile = 512
    while tile > 128 and est(tile) > budget:
        tile -= 128
    if n1 >= 128:
        tile = min(tile, _round_up(n1, 128))   # don't over-pad medium point clouds
    else:
        tile = _round_up(n1, 8)                # tiny inputs: one tile, full extent
    return tile


# ----------------------------------------------------------------------------
# Pallas kernel: fused 1x1-conv (BN-scale folded) + running max over neighbors
# + center term + bias + ReLU (after the max) + transposed (channels-first) store.
# ----------------------------------------------------------------------------
def _mlp_max_kernel(x_ref, w_ref, wc_ref, b_ref, o_ref):
    # x_ref:  (ns, tile_n, cin)   neighbor-major [dp | f] channels-last
    # w_ref:  (cin, co_pad)       BN-scale-folded [Wp ; Wf]
    # wc_ref: (cin, co_pad)       BN-scale-folded [0  ; Wc - Wf]   (center term)
    # b_ref:  (1, co_pad)         folded BN bias (f32)
    # o_ref:  (co_pad, tile_n)    output tile (channels-first, lane-dense over tile_n)
    ns = x_ref.shape[0]
    w = w_ref[...]
    x0 = x_ref[0]                                    # first-neighbor rows (= "center")
    # Running max over neighbors: each chunk is a clean 2-D (tile_n, cin) tile, the
    # max is pure VPU elementwise, f32 accumulation on the MXU path.
    m = jnp.dot(x0, w, preferred_element_type=jnp.float32)
    for j in range(1, ns):                           # ns is small & static -> unrolled
        m = jnp.maximum(m, jnp.dot(x_ref[j], w, preferred_element_type=jnp.float32))
    # Center term from the already-resident neighbor-0 rows (dp rows of wc are zero).
    cterm = jnp.dot(x0, wc_ref[...], preferred_element_type=jnp.float32)
    # bias + center + ReLU after the max: exact because ReLU is monotone and both are
    # constant over the neighborhood axis. Epilogue kept in f32.
    y = jnp.maximum(m + cterm + b_ref[...], 0.0)     # (tile_n, co_pad)
    o_ref[...] = y.T.astype(o_ref.dtype)             # transposed store (XLU), cast last


def mlp_max_pallas(x, w_main, w_cent, bias, *, out_dtype):
    """x [B, ns, N1, 3+c_in] -> out [B, co_pad, N1_pad] (channels-first)."""
    B, ns, n1, cin = x.shape
    co_pad = w_main.shape[-1]
    in_itemsize = jnp.dtype(x.dtype).itemsize
    out_itemsize = jnp.dtype(out_dtype).itemsize

    budget = _vmem_budget_bytes()
    tile_n = _pick_tile_n(n1, ns, cin, co_pad, in_itemsize, out_itemsize, budget)
    n1_pad = _round_up(n1, tile_n)
    if n1_pad != n1:
        # Padded query rows are harmless garbage; sliced off by the caller.
        x = jnp.pad(x, ((0, 0), (0, 0), (0, n1_pad - n1), (0, 0)))

    grid = (B, n1_pad // tile_n)
    flops = 2 * B * n1_pad * (ns + 1) * cin * co_pad
    bytes_accessed = int(x.size * in_itemsize
                         + (w_main.size + w_cent.size) * in_itemsize
                         + bias.size * 4
                         + B * co_pad * n1_pad * out_itemsize)

    return pl.pallas_call(
        _mlp_max_kernel,
        out_shape=jax.ShapeDtypeStruct((B, co_pad, n1_pad), out_dtype),
        grid_spec=pltpu.PrefetchScalarGridSpec(
            num_scalar_prefetch=0,
            grid=grid,
            in_specs=[
                pl.BlockSpec((None, ns, tile_n, cin), lambda b, i: (b, 0, i, 0)),
                pl.BlockSpec((cin, co_pad), lambda b, i: (0, 0)),
                pl.BlockSpec((cin, co_pad), lambda b, i: (0, 0)),
                pl.BlockSpec((1, co_pad), lambda b, i: (0, 0)),
            ],
            out_specs=pl.BlockSpec((None, co_pad, tile_n), lambda b, i: (b, 0, i)),
        ),
        compiler_params=pltpu.CompilerParams(
            dimension_semantics=("parallel", "parallel"),
            vmem_limit_bytes=int(budget),
        ),
        cost_estimate=pl.CostEstimate(flops=flops, transcendentals=0,
                                      bytes_accessed=bytes_accessed),
    )(x, w_main, w_cent, bias)


# ----------------------------------------------------------------------------
# Plain-JAX glue: MaskedQueryAndGroup (ordered masked ball query + gather,
# normalize_xyz=True, use_xyz=False, ret_grouped_xyz=True), vectorized.
# Returns neighbor-major, channels-last tensors (the layout the kernel wants).
# ----------------------------------------------------------------------------
def masked_query_and_group(query_xyz, support_xyz, query_mask, support_mask,
                           support_features, radius, nsample):
    """Returns:
      grouped_feat: [B, nsample, N1, C]   neighbor features
      rel_pos:      [B, nsample, N1, 3]   (neighbor - query) / radius
      nb_mask:      [B, nsample, N1]      1.0 where a valid neighbor was found
    """
    # TODO(synk): the data-dependent neighbor gather stays in plain JAX; pulling it
    # into the kernel (scalar-prefetched idx + manual DMA gather from HBM) would avoid
    # the grouped-feature HBM round trip but needs per-row DMA descriptors.
    B, N1, _ = query_xyz.shape
    N2 = support_xyz.shape[1]

    diff = query_xyz[:, :, None, :] - support_xyz[:, None, :, :]
    d2 = jnp.sum(diff * diff, axis=-1)                               # [B, N1, N2]
    valid = (d2 < radius * radius) & (support_mask[:, None, :] > 0)

    # First `nsample` valid support indices per query via one batched scatter.
    rank = jnp.cumsum(valid.astype(jnp.int32), axis=-1) - 1
    bucket = jnp.where(valid, jnp.minimum(rank, nsample), nsample)   # extras -> dump slot
    cols = jnp.arange(N2, dtype=jnp.int32)

    def scatter_row(bucket_row):
        return jnp.zeros((nsample + 1,), jnp.int32).at[bucket_row].set(cols)

    idx = jax.vmap(scatter_row)(bucket.reshape(B * N1, N2))
    idx = idx.reshape(B, N1, nsample + 1)[..., :nsample]             # [B, N1, ns]

    n_valid = jnp.sum(valid, axis=-1)                                # [B, N1]
    nb_mask = jnp.arange(nsample)[None, None, :] < n_valid[..., None]
    # TODO(synk): queries with zero valid neighbors fall back to support point 0 (and
    # query_mask is ignored) -- only the 'max' reduction path is implemented, where the
    # PyTorch module also ignores the neighborhood/query masks.
    idx = jnp.where(nb_mask, idx, idx[..., 0:1])                     # pad with first hit

    idx_t = jnp.swapaxes(idx, 1, 2)                                  # [B, ns, N1]
    feat_t = jnp.swapaxes(support_features, 1, 2)                    # [B, N2, C]
    grouped_feat = jax.vmap(lambda f, i: f[i])(feat_t, idx_t)        # [B, ns, N1, C]
    grouped_xyz = jax.vmap(lambda p, i: p[i])(support_xyz, idx_t)    # [B, ns, N1, 3]
    rel_pos = (grouped_xyz - query_xyz[:, None, :, :]) / radius      # normalize_xyz
    nb_mask_t = jnp.swapaxes(nb_mask, 1, 2).astype(jnp.float32)      # [B, ns, N1]
    return grouped_feat, rel_pos, nb_mask_t


# ----------------------------------------------------------------------------
# Parameter handling
# ----------------------------------------------------------------------------
def make_params(key, c_in, c_out):
    c_feat = 3 + 2 * c_in
    k1, k2, k3, k4, k5 = jax.random.split(key, 5)
    # Conv2d(c_feat, c_out, kernel_size=1, bias=False): weight [c_out, c_feat]
    w = jax.random.normal(k1, (c_out, c_feat), jnp.float32) / jnp.sqrt(c_feat)
    gamma = 1.0 + 0.1 * jax.random.normal(k2, (c_out,), jnp.float32)
    beta = 0.1 * jax.random.normal(k3, (c_out,), jnp.float32)
    running_mean = 0.1 * jax.random.normal(k4, (c_out,), jnp.float32)
    running_var = jnp.abs(jax.random.normal(k5, (c_out,), jnp.float32)) + 0.5
    return {"conv_w": w, "gamma": gamma, "beta": beta,
            "running_mean": running_mean, "running_var": running_var}


def fold_params(params, c_in):
    """Fold eval-mode BatchNorm into the conv weights and recombine the dp_fi_df conv:
         dp@Wp + c@Wc + (f-c)@Wf  =  [dp|f] @ [Wp;Wf]  +  [dp_0|f_0] @ [0; Wc-Wf]
       Output channels are zero-padded to a multiple of 128 (lane-dense stores)."""
    w = params["conv_w"]                                              # [c_out, 3+2*c_in]
    eps = 1e-5
    scale = params["gamma"] / jnp.sqrt(params["running_var"] + eps)   # [c_out]
    bias = params["beta"] - params["running_mean"] * scale            # [c_out]

    wp = w[:, :3]                    # dp weights
    wci = w[:, 3:3 + c_in]           # center weights
    wf = w[:, 3 + c_in:]             # (f - center) weights

    w_main = jnp.concatenate([wp, wf], axis=1).T * scale[None, :]                 # [3+c_in, c_out]
    w_cent = jnp.concatenate([jnp.zeros_like(wp), wci - wf], axis=1).T * scale[None, :]

    c_out = w.shape[0]
    co_pad = _round_up(c_out, 128)
    pad = ((0, 0), (0, co_pad - c_out))
    return (jnp.pad(w_main, pad), jnp.pad(w_cent, pad),
            jnp.pad(bias, (0, co_pad - c_out)).reshape(1, co_pad))


# ----------------------------------------------------------------------------
# LocalAggregation forward (respointnet2, dp_fi_df, num_mlps=1, reduction='max')
# ----------------------------------------------------------------------------
def local_aggregation_forward(params, query_xyz, support_xyz, query_mask,
                              support_mask, support_features, *, radius, nsample,
                              compute_dtype=jnp.bfloat16, out_dtype=None):
    B, N1, _ = query_xyz.shape
    c_in = support_features.shape[1]
    c_out = params["conv_w"].shape[0]
    out_dtype = compute_dtype if out_dtype is None else out_dtype

    # Cast features before the gather so the gathered/concatenated HBM arrays are
    # already in the (narrow) compute dtype.
    feat, rel_pos, _nb_mask = masked_query_and_group(
        query_xyz, support_xyz, query_mask, support_mask,
        support_features.astype(compute_dtype), radius, nsample)

    # Single fused channels-last, neighbor-major kernel input [dp | f]; the
    # center / (f - center) split is folded into the weights (no second feature copy).
    x = jnp.concatenate([rel_pos.astype(compute_dtype), feat], axis=-1)  # [B,ns,N1,3+C]

    w_main, w_cent, bias = fold_params(params, c_in)
    out = mlp_max_pallas(x,
                         w_main.astype(compute_dtype),
                         w_cent.astype(compute_dtype),
                         bias.astype(jnp.float32),
                         out_dtype=out_dtype)           # [B, co_pad, N1_pad]
    # Channel / query-point padding slice (a no-op when already aligned).
    return out[:, :c_out, :N1]                          # [B, C_out, N1]


# ----------------------------------------------------------------------------
# Pure-JAX reference (mirrors the PyTorch NCHW concat + 1x1 conv + BN + ReLU + max)
# ----------------------------------------------------------------------------
def reference_forward(params, query_xyz, support_xyz, query_mask, support_mask,
                      support_features, *, radius, nsample):
    feat, rel_pos, _ = masked_query_and_group(
        query_xyz, support_xyz, query_mask, support_mask, support_features,
        radius, nsample)
    f = jnp.transpose(feat, (0, 3, 2, 1))                 # [B, C, N1, ns]
    dp = jnp.transpose(rel_pos, (0, 3, 2, 1))             # [B, 3, N1, ns]
    center = jnp.broadcast_to(f[..., 0:1], f.shape)
    local = jnp.concatenate([dp, center, f - center], axis=1)
    y = jnp.einsum("bcns,dc->bdns", local, params["conv_w"])
    scale = params["gamma"] / jnp.sqrt(params["running_var"] + 1e-5)
    bias = params["beta"] - params["running_mean"] * scale
    y = y * scale[None, :, None, None] + bias[None, :, None, None]
    y = jnp.maximum(y, 0.0)
    return jnp.max(y, axis=-1)                            # [B, C_out, N1]


if __name__ == "__main__":
    B, N1, N2 = 2, 16, 32
    C_IN, C_OUT = 4, 8
    NSAMPLE = 8
    RADIUS = 0.4

    key = jax.random.PRNGKey(0)
    k_q, k_s, k_f, k_qm, k_sm, k_p = jax.random.split(key, 6)

    query_xyz = jax.random.uniform(k_q, (B, N1, 3), jnp.float32)
    support_xyz = jax.random.uniform(k_s, (B, N2, 3), jnp.float32)
    support_features = jax.random.normal(k_f, (B, C_IN, N2), jnp.float32)
    query_mask = (jax.random.uniform(k_qm, (B, N1)) > 0.1).astype(jnp.float32)
    support_mask = (jax.random.uniform(k_sm, (B, N2)) > 0.1).astype(jnp.float32)

    params = make_params(k_p, C_IN, C_OUT)

    ref = reference_forward(params, query_xyz, support_xyz, query_mask,
                            support_mask, support_features,
                            radius=RADIUS, nsample=NSAMPLE)

    # f32 compute/output path: tight check of the folded/decomposed kernel math.
    fwd_f32 = jax.jit(functools.partial(local_aggregation_forward,
                                        radius=RADIUS, nsample=NSAMPLE,
                                        compute_dtype=jnp.float32,
                                        out_dtype=jnp.float32))
    out_f32 = jax.block_until_ready(
        fwd_f32(params, query_xyz, support_xyz, query_mask, support_mask,
                support_features))
    assert out_f32.shape == (B, C_OUT, N1), out_f32.shape
    assert jnp.allclose(out_f32, ref, atol=1e-4, rtol=1e-4), "f32 mismatch vs reference"

    # Default path: bf16 MXU inputs + bf16 output (f32 accumulate / f32 epilogue kept).
    fwd_bf16 = jax.jit(functools.partial(local_aggregation_forward,
                                         radius=RADIUS, nsample=NSAMPLE))
    out_bf16 = jax.block_until_ready(
        fwd_bf16(params, query_xyz, support_xyz, query_mask, support_mask,
                 support_features))
    assert out_bf16.shape == (B, C_OUT, N1), out_bf16.shape
    assert out_bf16.dtype == jnp.bfloat16, out_bf16.dtype
    assert jnp.allclose(out_bf16.astype(jnp.float32), ref, atol=1e-1, rtol=1e-1), \
        "bf16 mismatch vs reference"

    print("KERNEL_OK")
</pallas_src>

<mosaic_0001>
module attributes {stable_mosaic.version = 11 : i64} {
  func.func @_mlp_max_kernel(%arg0: i32, %arg1: i32, %arg2: memref<1x8x16x7xf32, #tpu.memory_space<vmem>>, %arg3: memref<7x128xf32, #tpu.memory_space<vmem>>, %arg4: memref<7x128xf32, #tpu.memory_space<vmem>>, %arg5: memref<1x128xf32, #tpu.memory_space<vmem>>, %arg6: memref<1x128x16xf32, #tpu.memory_space<vmem>>) attributes {dimension_semantics = [#tpu.dimension_semantics<parallel>, #tpu.dimension_semantics<parallel>], iteration_bounds = array<i64: 2, 1>, scalar_prefetch = 0 : i64, scratch_operands = 0 : i64, tpu.core_type = #tpu.core_type<tc>, window_params = [{transform_indices = @transform_0, window_bounds = array<i64: 1, 8, 16, 7>}, {pipeline_mode = #tpu.pipeline_mode<synchronous>, transform_indices = @transform_1, window_bounds = array<i64: 7, 128>}, {pipeline_mode = #tpu.pipeline_mode<synchronous>, transform_indices = @transform_2, window_bounds = array<i64: 7, 128>}, {pipeline_mode = #tpu.pipeline_mode<synchronous>, transform_indices = @transform_3, window_bounds = array<i64: 1, 128>}, {transform_indices = @transform_4, window_bounds = array<i64: 1, 128, 16>}]} {
    %c0 = arith.constant 0 : index
    %c0_0 = arith.constant 0 : index
    %0 = vector.load %arg3[%c0, %c0_0] : memref<7x128xf32, #tpu.memory_space<vmem>>, vector<7x128xf32>
    %c0_1 = arith.constant 0 : index
    %c0_2 = arith.constant 0 : index
    %c0_3 = arith.constant 0 : index
    %c0_4 = arith.constant 0 : index
    %1 = vector.load %arg2[%c0_1, %c0_2, %c0_3, %c0_4] : memref<1x8x16x7xf32, #tpu.memory_space<vmem>>, vector<1x1x16x7xf32>
    %2 = vector.shape_cast %1 : vector<1x1x16x7xf32> to vector<16x7xf32>
    %cst = arith.constant dense<0.000000e+00> : vector<16x128xf32>
    %3 = tpu.matmul %2, %0, %cst {dimension_numbers = #tpu.dot_dimension_numbers<[1], [0], [0], [1], [0, 0, 1, 1], [], []>} : vector<16x7xf32>, vector<7x128xf32>, vector<16x128xf32> -> vector<16x128xf32>
    %c0_5 = arith.constant 0 : index
    %c1 = arith.constant 1 : index
    %c0_6 = arith.constant 0 : index
    %c0_7 = arith.constant 0 : index
    %4 = vector.load %arg2[%c0_5, %c1, %c0_6, %c0_7] : memref<1x8x16x7xf32, #tpu.memory_space<vmem>>, vector<1x1x16x7xf32>
    %5 = vector.shape_cast %4 : vector<1x1x16x7xf32> to vector<16x7xf32>
    %cst_8 = arith.constant dense<0.000000e+00> : vector<16x128xf32>
    %6 = tpu.matmul %5, %0, %cst_8 {dimension_numbers = #tpu.dot_dimension_numbers<[1], [0], [0], [1], [0, 0, 1, 1], [], []>} : vector<16x7xf32>, vector<7x128xf32>, vector<16x128xf32> -> vector<16x128xf32>
    %7 = arith.maximumf %3, %6 : vector<16x128xf32>
    %c0_9 = arith.constant 0 : index
    %c2 = arith.constant 2 : index
    %c0_10 = arith.constant 0 : index
    %c0_11 = arith.constant 0 : index
    %8 = vector.load %arg2[%c0_9, %c2, %c0_10, %c0_11] : memref<1x8x16x7xf32, #tpu.memory_space<vmem>>, vector<1x1x16x7xf32>
    %9 = vector.shape_cast %8 : vector<1x1x16x7xf32> to vector<16x7xf32>
    %cst_12 = arith.constant dense<0.000000e+00> : vector<16x128xf32>
    %10 = tpu.matmul %9, %0, %cst_12 {dimension_numbers = #tpu.dot_dimension_numbers<[1], [0], [0], [1], [0, 0, 1, 1], [], []>} : vector<16x7xf32>, vector<7x128xf32>, vector<16x128xf32> -> vector<16x128xf32>
    %11 = arith.maximumf %7, %10 : vector<16x128xf32>
    %c0_13 = arith.constant 0 : index
    %c3 = arith.constant 3 : index
    %c0_14 = arith.constant 0 : index
    %c0_15 = arith.constant 0 : index
    %12 = vector.load %arg2[%c0_13, %c3, %c0_14, %c0_15] : memref<1x8x16x7xf32, #tpu.memory_space<vmem>>, vector<1x1x16x7xf32>
    %13 = vector.shape_cast %12 : vector<1x1x16x7xf32> to vector<16x7xf32>
    %cst_16 = arith.constant dense<0.000000e+00> : vector<16x128xf32>
    %14 = tpu.matmul %13, %0, %cst_16 {dimension_numbers = #tpu.dot_dimension_numbers<[1], [0], [0], [1], [0, 0, 1, 1], [], []>} : vector<16x7xf32>, vector<7x128xf32>, vector<16x128xf32> -> vector<16x128xf32>
    %15 = arith.maximumf %11, %14 : vector<16x128xf32>
    %c0_17 = arith.constant 0 : index
    %c4 = arith.constant 4 : index
    %c0_18 = arith.constant 0 : index
    %c0_19 = arith.constant 0 : index
    %16 = vector.load %arg2[%c0_17, %c4, %c0_18, %c0_19] : memref<1x8x16x7xf32, #tpu.memory_space<vmem>>, vector<1x1x16x7xf32>
    %17 = vector.shape_cast %16 : vector<1x1x16x7xf32> to vector<16x7xf32>
    %cst_20 = arith.constant dense<0.000000e+00> : vector<16x128xf32>
    %18 = tpu.matmul %17, %0, %cst_20 {dimension_numbers = #tpu.dot_dimension_numbers<[1], [0], [0], [1], [0, 0, 1, 1], [], []>} : vector<16x7xf32>, vector<7x128xf32>, vector<16x128xf32> -> vector<16x128xf32>
    %19 = arith.maximumf %15, %18 : vector<16x128xf32>
    %c0_21 = arith.constant 0 : index
    %c5 = arith.constant 5 : index
    %c0_22 = arith.constant 0 : index
    %c0_23 = arith.constant 0 : index
    %20 = vector.load %arg2[%c0_21, %c5, %c0_22, %c0_23] : memref<1x8x16x7xf32, #tpu.memory_space<vmem>>, vector<1x1x16x7xf32>
    %21 = vector.shape_cast %20 : vector<1x1x16x7xf32> to vector<16x7xf32>
    %cst_24 = arith.constant dense<0.000000e+00> : vector<16x128xf32>
    %22 = tpu.matmul %21, %0, %cst_24 {dimension_numbers = #tpu.dot_dimension_numbers<[1], [0], [0], [1], [0, 0, 1, 1], [], []>} : vector<16x7xf32>, vector<7x128xf32>, vector<16x128xf32> -> vector<16x128xf32>
    %23 = arith.maximumf %19, %22 : vector<16x128xf32>
    %c0_25 = arith.constant 0 : index
    %c6 = arith.constant 6 : index
    %c0_26 = arith.constant 0 : index
    %c0_27 = arith.constant 0 : index
    %24 = vector.load %arg2[%c0_25, %c6, %c0_26, %c0_27] : memref<1x8x16x7xf32, #tpu.memory_space<vmem>>, vector<1x1x16x7xf32>
    %25 = vector.shape_cast %24 : vector<1x1x16x7xf32> to vector<16x7xf32>
    %cst_28 = arith.constant dense<0.000000e+00> : vector<16x128xf32>
    %26 = tpu.matmul %25, %0, %cst_28 {dimension_numbers = #tpu.dot_dimension_numbers<[1], [0], [0], [1], [0, 0, 1, 1], [], []>} : vector<16x7xf32>, vector<7x128xf32>, vector<16x128xf32> -> vector<16x128xf32>
    %27 = arith.maximumf %23, %26 : vector<16x128xf32>
    %c0_29 = arith.constant 0 : index
    %c7 = arith.constant 7 : index
    %c0_30 = arith.constant 0 : index
    %c0_31 = arith.constant 0 : index
    %28 = vector.load %arg2[%c0_29, %c7, %c0_30, %c0_31] : memref<1x8x16x7xf32, #tpu.memory_space<vmem>>, vector<1x1x16x7xf32>
    %29 = vector.shape_cast %28 : vector<1x1x16x7xf32> to vector<16x7xf32>
    %cst_32 = arith.constant dense<0.000000e+00> : vector<16x128xf32>
    %30 = tpu.matmul %29, %0, %cst_32 {dimension_numbers = #tpu.dot_dimension_numbers<[1], [0], [0], [1], [0, 0, 1, 1], [], []>} : vector<16x7xf32>, vector<7x128xf32>, vector<16x128xf32> -> vector<16x128xf32>
    %31 = arith.maximumf %27, %30 : vector<16x128xf32>
    %c0_33 = arith.constant 0 : index
    %c0_34 = arith.constant 0 : index
    %32 = vector.load %arg4[%c0_33, %c0_34] : memref<7x128xf32, #tpu.memory_space<vmem>>, vector<7x128xf32>
    %cst_35 = arith.constant dense<0.000000e+00> : vector<16x128xf32>
    %33 = tpu.matmul %2, %32, %cst_35 {dimension_numbers = #tpu.dot_dimension_numbers<[1], [0], [0], [1], [0, 0, 1, 1], [], []>} : vector<16x7xf32>, vector<7x128xf32>, vector<16x128xf32> -> vector<16x128xf32>
    %34 = arith.addf %31, %33 : vector<16x128xf32>
    %c0_36 = arith.constant 0 : index
    %c0_37 = arith.constant 0 : index
    %35 = vector.load %arg5[%c0_36, %c0_37] : memref<1x128xf32, #tpu.memory_space<vmem>>, vector<1x128xf32>
    %36 = vector.broadcast %35 : vector<1x128xf32> to vector<16x128xf32>
    %37 = arith.addf %34, %36 : vector<16x128xf32>
    %cst_38 = arith.constant 0.000000e+00 : f32
    %38 = vector.broadcast %cst_38 : f32 to vector<16x128xf32>
    %39 = arith.maximumf %37, %38 : vector<16x128xf32>
    %40 = tpu.transpose %39, [1, 0] : vector<16x128xf32> -> vector<128x16xf32>
    %c0_39 = arith.constant 0 : index
    %c0_40 = arith.constant 0 : index
    %c0_41 = arith.constant 0 : index
    %41 = vector.load %arg6[%c0_39, %c0_40, %c0_41] : memref<1x128x16xf32, #tpu.memory_space<vmem>>, vector<1x128x16xf32>
    %42 = vector.shape_cast %41 : vector<1x128x16xf32> to vector<128x16xf32>
    %43 = vector.shape_cast %40 : vector<128x16xf32> to vector<1x128x16xf32>
    tpu.vector_store %arg6[%c0_39, %c0_40, %c0_41], %43 {strides = array<i32>} : memref<1x128x16xf32, #tpu.memory_space<vmem>>, vector<1x128x16xf32>,
    return
  }
  func.func @transform_0(%arg0: i32, %arg1: i32) -> (i32, i32, i32, i32) {
    %c0_i32 = arith.constant 0 : i32
    %c0_i32_0 = arith.constant 0 : i32
    %c0_i32_1 = arith.constant 0 : i32
    return %arg0, %c0_i32, %arg1, %c0_i32_0 : i32, i32, i32, i32
  }
  func.func @transform_1(%arg0: i32, %arg1: i32) -> (i32, i32) {
    %c0_i32 = arith.constant 0 : i32
    %c0_i32_0 = arith.constant 0 : i32
    %c0_i32_1 = arith.constant 0 : i32
    return %c0_i32, %c0_i32_0 : i32, i32
  }
  func.func @transform_2(%arg0: i32, %arg1: i32) -> (i32, i32) {
    %c0_i32 = arith.constant 0 : i32
    %c0_i32_0 = arith.constant 0 : i32
    %c0_i32_1 = arith.constant 0 : i32
    return %c0_i32, %c0_i32_0 : i32, i32
  }
  func.func @transform_3(%arg0: i32, %arg1: i32) -> (i32, i32) {
    %c0_i32 = arith.constant 0 : i32
    %c0_i32_0 = arith.constant 0 : i32
    %c0_i32_1 = arith.constant 0 : i32
    return %c0_i32, %c0_i32_0 : i32, i32
  }
  func.func @transform_4(%arg0: i32, %arg1: i32) -> (i32, i32, i32) {
    %c0_i32 = arith.constant 0 : i32
    %c0_i32_0 = arith.constant 0 : i32
    return %arg0, %c0_i32, %arg1 : i32, i32, i32
  }
}

</mosaic_0001>

<llo_original>
// kernel: sub.29
$region0: #{sub.29}
  #allocation0 [shape = 's32[1]{0}', space=sflag, size = 0x4, scoped, tag = 'scoped memory for sub.29']
  %s0 = inlined_call_operand.vmem [shape: f32[8,4], index: 0, kind: input, shape index: {}]
  %s1 = inlined_call_operand.vmem [shape: f32[8,4], index: 1, kind: input, shape index: {}]
  %s2 = inlined_call_operand.vmem [shape: f32[8,4], index: 2, kind: output, shape index: {}]
  %v3 = vld [vmem:[%s0] sm:$0xf]
  %v4 = vld [vmem:[%s1] sm:$0xf]
  %5 = xla_tuple %v3, %v4
  %6 = xla_tuple %5
  %v7 = vsub.f32 %v3, %v4
  %8 = xla_tuple %v7
  %9 = vst [vmem:[%s2] sm:$0xf] %v7

// kernel: local_aggregation_forward.1
$region0: #{local_aggregation_forward.1}
  #allocation0 [shape = 'u32[]', space=smem, size = 0x4, offset = 0x4, fixed_abs, tag = 'smem constant byte address 0x4 - core index']
  #allocation1 [shape = 'u32[144,128]{1,0:T(1,128)}', space=vmem, size = 0x12000, scoped, tag = 'internal scratch']
  %s0 = inlined_call_operand.vmem [shape: f32[2,8,16,7], index: 0, kind: input, shape index: {}]
  %s1 = inlined_call_operand.vmem [shape: f32[7,128], index: 1, kind: input, shape index: {}]
  %s2 = inlined_call_operand.vmem [shape: f32[7,128], index: 2, kind: input, shape index: {}]
  %s3 = inlined_call_operand.vmem [shape: f32[1,128], index: 3, kind: input, shape index: {}]
  %s4 = inlined_call_operand.vmem [shape: f32[2,128,16], index: 4, kind: output, shape index: {}]
  %s5 = sld [smem:[#allocation0]]
  $region49: #{local_aggregation_forward.1} parent=0
    _
  %s7 = ssub.s32 1, %s5
  %s8 = scalar_select 0, %s7, %s5
  loop: start=0, step=1, limit=4
  $region2: #{local_aggregation_forward.1} parent=0 // loop_pre_header
    _
  $region3: #{local_aggregation_forward.1} parent=0 // loop_header
    %s10 = sphi 0, %s14
    %p11 = scmp.ge.s32.totalorder %s10, 4
    %s17 = sphi 0, %s29
    %s18 = sphi 0, %s25
    %s19 = sphi 0, %s17
    %s20 = sphi 0, %s18
    %s21 = sphi 0, %s19
    %s22 = sphi 0, %s20
    %s34 = sphi 0, %s36
    %s37 = sphi 0, %s34
    %s38 = sphi 0, %s37
    %s54 = sphi 0, %s38
    %s58 = sphi 0, %s58
    %s60 = sphi 0, %s58
    %s61 = sphi 0, %s60
    %s75 = sphi 0, %s61
    %s79 = sphi 0, %s79
    %s81 = sphi 0, %s79
    %s82 = sphi 0, %s81
    %s96 = sphi 0, %s82
    %s100 = sphi 0, %s100
    %s102 = sphi 0, %s100
    %s103 = sphi 0, %s102
    %s117 = sphi 0, %s103
    %s125 = sphi 0, %s127
    %s128 = sphi 0, %s125
    %s129 = sphi 0, %s128
    %s145 = sphi 0, %s129
  $region4: #{local_aggregation_forward.1} parent=0 // loop_header_branch
    %13 = sbr.rel (%p11) target = $region8
  $region5: #{local_aggregation_forward.1} parent=0 // loop_body
    %s15 = ssub.s32 %s10, 1
    %s16 = ssub.s32 %s10, 2
    %s23 = sadd.s32 1, %s18
    %p24 = scmp.ge.s32.totalorder %s23, 1
    %s25 = scalar_select %p24, 0, %s23
    %s26 = sadd.s32 1, %s17
    %s27 = scalar_select %p24, %s26, %s17
    %p28 = scmp.ge.s32.totalorder %s27, 2
    %s29 = scalar_select %p28, 0, %s27
    %s30 = ssub.s32 %s17, %s29
    %s31 = ssub.s32 %s18, %s25
    %s32 = sor.u32 %s30, %s31
    %p33 = scmp.eq.s32.totalorder %s32, 0
    %s35 = sadd.s32 %s34, 1
    %s36 = scalar_select %p33, %s34, %s35
    %p39 = pneg %p33
    %p40 = scmp.eq.s32.totalorder %s10, 1
    %p41 = por %p39, %p40
    %p42 = scmp.ne.s32.totalorder %s34, %s37
    %p43 = scmp.eq.s32.totalorder %s10, 0
    %p44 = por %p42, %p43
    %p45 = scmp.ne.s32.totalorder %s34, %s37
    %p46 = scmp.eq.s32.totalorder %s15, 1
    %p47 = por %p45, %p46
    %p48 = scmp.ne.s32.totalorder %s37, %s38
    %p49 = scmp.eq.s32.totalorder %s15, 0
    %p50 = por %p48, %p49
    %p51 = scmp.ne.s32.totalorder %s37, %s38
    %p52 = scmp.eq.s32.totalorder %s16, 1
    %p53 = por %p51, %p52
    %p55 = scmp.ne.s32.totalorder %s38, %s54
    %p56 = scmp.eq.s32.totalorder %s16, 0
    %p57 = por %p55, %p56
    %s59 = sadd.s32 %s58, 1
    %p62 = scmp.eq.s32.totalorder %s10, 1
    %p63 = scmp.ne.s32.totalorder %s58, %s60
    %p64 = scmp.eq.s32.totalorder %s10, 0
    %p65 = por %p63, %p64
    %p66 = scmp.ne.s32.totalorder %s58, %s60
    %p67 = scmp.eq.s32.totalorder %s15, 1
    %p68 = por %p66, %p67
    %p69 = scmp.ne.s32.totalorder %s60, %s61
    %p70 = scmp.eq.s32.totalorder %s15, 0
    %p71 = por %p69, %p70
    %p72 = scmp.ne.s32.totalorder %s60, %s61
    %p73 = scmp.eq.s32.totalorder %s16, 1
    %p74 = por %p72, %p73
    %p76 = scmp.ne.s32.totalorder %s61, %s75
    %p77 = scmp.eq.s32.totalorder %s16, 0
    %p78 = por %p76, %p77
    %s80 = sadd.s32 %s79, 1
    %p83 = scmp.eq.s32.totalorder %s10, 1
    %p84 = scmp.ne.s32.totalorder %s79, %s81
    %p85 = scmp.eq.s32.totalorder %s10, 0
    %p86 = por %p84, %p85
    %p87 = scmp.ne.s32.totalorder %s79, %s81
    %p88 = scmp.eq.s32.totalorder %s15, 1
    %p89 = por %p87, %p88
    %p90 = scmp.ne.s32.totalorder %s81, %s82
    %p91 = scmp.eq.s32.totalorder %s15, 0
    %p92 = por %p90, %p91
    %p93 = scmp.ne.s32.totalorder %s81, %s82
    %p94 = scmp.eq.s32.totalorder %s16, 1
    %p95 = por %p93, %p94
    %p97 = scmp.ne.s32.totalorder %s82, %s96
    %p98 = scmp.eq.s32.totalorder %s16, 0
    %p99 = por %p97, %p98
    %s101 = sadd.s32 %s100, 1
    %p104 = scmp.eq.s32.totalorder %s10, 1
    %p105 = scmp.ne.s32.totalorder %s100, %s102
    %p106 = scmp.eq.s32.totalorder %s10, 0
    %p107 = por %p105, %p106
    %p108 = scmp.ne.s32.totalorder %s100, %s102
    %p109 = scmp.eq.s32.totalorder %s15, 1
    %p110 = por %p108, %p109
    %p111 = scmp.ne.s32.totalorder %s102, %s103
    %p112 = scmp.eq.s32.totalorder %s15, 0
    %p113 = por %p111, %p112
    %p114 = scmp.ne.s32.totalorder %s102, %s103
    %p115 = scmp.eq.s32.totalorder %s16, 1
    %p116 = por %p114, %p115
    %p118 = scmp.ne.s32.totalorder %s103, %s117
    %p119 = scmp.eq.s32.totalorder %s16, 0
    %p120 = por %p118, %p119
    %s121 = ssub.s32 %s17, %s29
    %s122 = ssub.s32 %s18, %s25
    %s123 = sor.u32 %s121, %s122
    %p124 = scmp.eq.s32.totalorder %s123, 0
    %s126 = sadd.s32 %s125, 1
    %s127 = scalar_select %p124, %s125, %s126
    %p130 = pneg %p124
    %p131 = scmp.eq.s32.totalorder %s10, 1
    %p132 = por %p130, %p131
    %p133 = scmp.ne.s32.totalorder %s125, %s128
    %p134 = scmp.eq.s32.totalorder %s10, 0
    %p135 = por %p133, %p134
    %p136 = scmp.ne.s32.totalorder %s125, %s128
    %p137 = scmp.eq.s32.totalorder %s15, 1
    %p138 = por %p136, %p137
    %p139 = scmp.ne.s32.totalorder %s128, %s129
    %p140 = scmp.eq.s32.totalorder %s15, 0
    %p141 = por %p139, %p140
    %p142 = scmp.ne.s32.totalorder %s128, %s129
    %p143 = scmp.eq.s32.totalorder %s16, 1
    %p144 = por %p142, %p143
    %p146 = scmp.ne.s32.totalorder %s129, %s145
    %p147 = scmp.eq.s32.totalorder %s16, 0
    %p148 = por %p146, %p147
    %p149 = scmp.le.s32.totalorder 1, %s10
    %p150 = scmp.lt.s32.totalorder %s10, 3
    %p151 = pnand %p149, %p150
    %p152 = pneg %p151
    // Predicated region
    $region9: #{local_aggregation_forward.1} parent=5 // pred_check
      _
    $region10: #{local_aggregation_forward.1} parent=5 // pred_check_branch
      %154 = sbr.rel (%p151) target = $region12
    $region11: #{local_aggregation_forward.1} parent=5 // pred_region
      %s155 = ssub.s32 %s10, 1
      // Predicated region
      $region13: #{local_aggregation_forward.1} parent=11 // pred_check
        %p156 = pneg %p71
      $region14: #{local_aggregation_forward.1} parent=11 // pred_check_branch
        %158 = sbr.rel (%p156) target = $region16
      $region15: #{local_aggregation_forward.1} parent=11 // pred_region
        _
      $region16: #{local_aggregation_forward.1} parent=11 // pred_fallthru
        _
      // Predicated region
      $region17: #{local_aggregation_forward.1} parent=11 // pred_check
        %p159 = pneg %p92
      $region18: #{local_aggregation_forward.1} parent=11 // pred_check_branch
        %161 = sbr.rel (%p159) target = $region20
      $region19: #{local_aggregation_forward.1} parent=11 // pred_region
        _
      $region20: #{local_aggregation_forward.1} parent=11 // pred_fallthru
        _
      // Predicated region
      $region21: #{local_aggregation_forward.1} parent=11 // pred_check
        %p162 = pneg %p113
      $region22: #{local_aggregation_forward.1} parent=11 // pred_check_branch
        %164 = sbr.rel (%p162) target = $region24
      $region23: #{local_aggregation_forward.1} parent=11 // pred_region
        _
      $region24: #{local_aggregation_forward.1} parent=11 // pred_fallthru
        _
    $region12: #{local_aggregation_forward.1} parent=5 // pred_fallthru
      _
    %p165 = scmp.lt.s32.totalorder %s10, 2
    // Predicated region
    $region25: #{local_aggregation_forward.1} parent=5 // pred_check
      %p166 = pneg %p165
    $region26: #{local_aggregation_forward.1} parent=5 // pred_check_branch
      %168 = sbr.rel (%p166) target = $region28
    $region27: #{local_aggregation_forward.1} parent=5 // pred_region
      // Predicated region
      $region29: #{local_aggregation_forward.1} parent=27 // pred_check
        %p169 = pneg %p44
      $region30: #{local_aggregation_forward.1} parent=27 // pred_check_branch
        %171 = sbr.rel (%p169) target = $region32
      $region31: #{local_aggregation_forward.1} parent=27 // pred_region
        %s172 = smul.u32 2, %s18
        %p173 = scmp.lt.s32.totalorder %s17, 1
        %s174 = scalar_select %p173, %s17, 1
        %p175 = scmp.lt.s32.totalorder %s172, 1
        %s176 = scalar_select %p175, %s172, 1
        %s177 = smul.addr %s174, 16
        %s178 = sadd.s32 %s176, %s177
        %s179 = smul.addr %s178, 8
        %s180 = scalar_lea.vmem %s0, %s179
        %s181 = smul.u32 2, %s18
      $region32: #{local_aggregation_forward.1} parent=27 // pred_fallthru
        _
    $region28: #{local_aggregation_forward.1} parent=5 // pred_fallthru
      _
    %p182 = scmp.le.s32.totalorder 1, %s10
    %p183 = scmp.lt.s32.totalorder %s10, 3
    %p184 = pnand %p182, %p183
    %p185 = pneg %p184
    // Predicated region
    $region33: #{local_aggregation_forward.1} parent=5 // pred_check
      _
    $region34: #{local_aggregation_forward.1} parent=5 // pred_check_branch
      %187 = sbr.rel (%p184) target = $region36
    $region35: #{local_aggregation_forward.1} parent=5 // pred_region
      %s188 = ssub.s32 %s10, 1
      %s189 = smul.u32 2, %s20
      %p190 = scmp.lt.s32.totalorder %s19, 1
      %s191 = scalar_select %p190, %s19, 1
      %p192 = scmp.lt.s32.totalorder %s189, 1
      %s193 = scalar_select %p192, %s189, 1
      %s194 = smul.addr %s191, 16
      %s195 = sadd.s32 %s193, %s194
      %s196 = smul.addr %s195, 8
      %s197 = scalar_lea.vmem %s0, %s196
      %p198 = pneg %p50
      %p199 = pneg %p47
      %p200 = pneg %p71
      %p201 = pneg %p68
      %p202 = pneg %p92
      %p203 = pneg %p89
      %p204 = pneg %p113
      %p205 = pneg %p110
      %p206 = pneg %p141
      %p207 = pneg %p138
      %p208 = scmp.lt.s32.totalorder %s19, 1
      %s209 = scalar_select %p208, %s19, 1
      %p210 = scmp.lt.s32.totalorder %s20, 0
      %s211 = scalar_select %p210, %s20, 0
      %s212 = smul.addr %s209, 16
      %s213 = sadd.s32 %s211, %s212
      %s214 = smul.addr %s213, 8
      %s215 = scalar_lea.vmem %s4, %s214
      %s216 = smul.u32 2, %s20
      %p217 = scmp.lt.s32.totalorder %s19, 1
      %s218 = scalar_select %p217, %s19, 1
      %p219 = scmp.lt.s32.totalorder %s216, 1
      %s220 = scalar_select %p219, %s216, 1
      %s221 = smul.addr %s218, 16
      %s222 = sadd.s32 %s220, %s221
      %s223 = smul.addr %s222, 8
      %s224 = scalar_lea.vmem %s0, %s223
      %s225 = smul.u32 2, %s20
      %p226 = scmp.lt.s32.totalorder %s19, 1
      %s227 = scalar_select %p226, %s19, 1
      %p228 = scmp.lt.s32.totalorder %s20, 0
      %s229 = scalar_select %p228, %s20, 0
      %s230 = smul.addr %s227, 16
      %s231 = sadd.s32 %s229, %s230
      %s232 = smul.addr %s231, 8
      %s233 = scalar_lea.vmem %s4, %s232
      %v234 = vld [vmem:[%s1] sm:$0x7f]
      %v235 = vld [vmem:[%s224] sm:$0xff]
      %v236 = vld [vmem:[%s224 + $0x8] sm:$0xff]
      %vm237 = vcmask 56320
      %v239 = vsel %vm237, %v235, 0
      %v242 = vsel %vm237, %v236, 0
      %vm244 = vcmask 1046528
      %v246 = vsel %vm244, %v234, 0
      %248 = vmatprep.subr.mxu0 0.0
      %249 = vmatpush1.msra.mxu0 0.0
      %250 = vmatprep.subr.mxu0 0.0
      %251 = vmatpush1.msra.mxu0 0.0
      %252 = vmatprep.subr.mxu0 0.0
      %253 = vmatpush1.msra.mxu0 0.0
      %254 = vmatprep.subr.mxu0 0.0
      %255 = vmatpush1.msra.mxu0 0.0
      %256 = vmatprep.subr.mxu0 0.0
      %257 = vmatpush1.msra.mxu0 0.0
      %258 = vmatprep.subr.mxu0 0.0
      %259 = vmatpush1.msra.mxu0 0.0
      %260 = vmatprep.subr.mxu0 0.0
      %261 = vmatpush1.msra.mxu0 0.0
      %262 = vmatprep.subr.mxu0 0.0
      %263 = vmatpush1.msra.mxu0 0.0
      %264 = vmatprep.subr.mxu0 0.0
      %265 = vmatpush1.msra.mxu0 0.0
      %266 = vmatprep.subr.mxu0 0.0
      %267 = vmatpush1.msra.mxu0 0.0
      %268 = vmatprep.subr.mxu0 0.0
      %269 = vmatpush1.msra.mxu0 0.0
      %270 = vmatprep.subr.mxu0 0.0
      %271 = vmatpush1.msra.mxu0 0.0
      %272 = vmatprep.subr.mxu0 0.0
      %273 = vmatpush1.msra.mxu0 0.0
      %274 = vmatprep.subr.mxu0 0.0
      %275 = vmatpush1.msra.mxu0 0.0
      %276 = vmatprep.subr.mxu0 0.0
      %277 = vmatpush1.msra.mxu0 0.0
      %278 = vmatprep.subr.mxu0 0.0
      %279 = vmatpush1.msra.mxu0 %v246
      %280 = vmatprep.subr.mxu0 0.0
      %281 = vmatpush2.msra.mxu0 0.0
      %282 = vmatprep.subr.mxu0 0.0
      %283 = vmatpush2.msra.mxu0 0.0
      %284 = vmatprep.subr.mxu0 0.0
      %285 = vmatpush2.msra.mxu0 0.0
      %286 = vmatprep.subr.mxu0 0.0
      %287 = vmatpush2.msra.mxu0 0.0
      %288 = vmatprep.subr.mxu0 0.0
      %289 = vmatpush2.msra.mxu0 0.0
      %290 = vmatprep.subr.mxu0 0.0
      %291 = vmatpush2.msra.mxu0 0.0
      %292 = vmatprep.subr.mxu0 0.0
      %293 = vmatpush2.msra.mxu0 0.0
      %294 = vmatprep.subr.mxu0 0.0
      %295 = vmatpush2.msra.mxu0 0.0
      %296 = vmatprep.subr.mxu0 0.0
      %297 = vmatpush2.msra.mxu0 0.0
      %298 = vmatprep.subr.mxu0 0.0
      %299 = vmatpush2.msra.mxu0 0.0
      %300 = vmatprep.subr.mxu0 0.0
      %301 = vmatpush2.msra.mxu0 0.0
      %302 = vmatprep.subr.mxu0 0.0
      %303 = vmatpush2.msra.mxu0 0.0
      %304 = vmatprep.subr.mxu0 0.0
      %305 = vmatpush2.msra.mxu0 0.0
      %306 = vmatprep.subr.mxu0 0.0
      %307 = vmatpush2.msra.mxu0 0.0
      %308 = vmatprep.subr.mxu0 0.0
      %309 = vmatpush2.msra.mxu0 0.0
      %310 = vmatprep.subr.mxu0 0.0
      %311 = vmatpush2.msra.mxu0 0.0
      %312 = vmatprep.mubr.f32.mxu0 0.0
      %313 = vmatmul.mubr.f32.gmra.mxu0 %v239
      %v314 = vpop.f32.mrf.mxu0
      %v315 = vadd.f32 0.0, %v314
      %v316 = vpop.f32.mrf.mxu0
      %317 = vmatprep.mubr.f32.mxu0 0.0
      %318 = vmatmul.mubr.f32.gmra.mxu0 %v242
      %v319 = vpop.f32.mrf.mxu0
      %v320 = vadd.f32 0.0, %v319
      %v321 = vpop.f32.mrf.mxu0
      %322 = vdwg.mxu0
      %s323 = scalar_lea.vmem %s224, 16
      %v324 = vld [vmem:[%s323] sm:$0xff]
      %v325 = vld [vmem:[%s323 + $0x8] sm:$0xff]
      %v327 = vsel %vm237, %v324, 0
      %v330 = vsel %vm237, %v325, 0
      %332 = vmatprep.subr.mxu0 0.0
      %333 = vmatpush1.msra.mxu0 0.0
      %334 = vmatprep.subr.mxu0 0.0
      %335 = vmatpush1.msra.mxu0 0.0
      %336 = vmatprep.subr.mxu0 0.0
      %337 = vmatpush1.msra.mxu0 0.0
      %338 = vmatprep.subr.mxu0 0.0
      %339 = vmatpush1.msra.mxu0 0.0
      %340 = vmatprep.subr.mxu0 0.0
      %341 = vmatpush1.msra.mxu0 0.0
      %342 = vmatprep.subr.mxu0 0.0
      %343 = vmatpush1.msra.mxu0 0.0
      %344 = vmatprep.subr.mxu0 0.0
      %345 = vmatpush1.msra.mxu0 0.0
      %346 = vmatprep.subr.mxu0 0.0
      %347 = vmatpush1.msra.mxu0 0.0
      %348 = vmatprep.subr.mxu0 0.0
      %349 = vmatpush1.msra.mxu0 0.0
      %350 = vmatprep.subr.mxu0 0.0
      %351 = vmatpush1.msra.mxu0 0.0
      %352 = vmatprep.subr.mxu0 0.0
      %353 = vmatpush1.msra.mxu0 0.0
      %354 = vmatprep.subr.mxu0 0.0
      %355 = vmatpush1.msra.mxu0 0.0
      %356 = vmatprep.subr.mxu0 0.0
      %357 = vmatpush1.msra.mxu0 0.0
      %358 = vmatprep.subr.mxu0 0.0
      %359 = vmatpush1.msra.mxu0 0.0
      %360 = vmatprep.subr.mxu0 0.0
      %361 = vmatpush1.msra.mxu0 0.0
      %362 = vmatprep.subr.mxu0 0.0
      %363 = vmatpush1.msra.mxu0 %v246
      %364 = vmatprep.subr.mxu0 0.0
      %365 = vmatpush2.msra.mxu0 0.0
      %366 = vmatprep.subr.mxu0 0.0
      %367 = vmatpush2.msra.mxu0 0.0
      %368 = vmatprep.subr.mxu0 0.0
      %369 = vmatpush2.msra.mxu0 0.0
      %370 = vmatprep.subr.mxu0 0.0
      %371 = vmatpush2.msra.mxu0 0.0
      %372 = vmatprep.subr.mxu0 0.0
      %373 = vmatpush2.msra.mxu0 0.0
      %374 = vmatprep.subr.mxu0 0.0
      %375 = vmatpush2.msra.mxu0 0.0
      %376 = vmatprep.subr.mxu0 0.0
      %377 = vmatpush2.msra.mxu0 0.0
      %378 = vmatprep.subr.mxu0 0.0
      %379 = vmatpush2.msra.mxu0 0.0
      %380 = vmatprep.subr.mxu0 0.0
      %381 = vmatpush2.msra.mxu0 0.0
      %382 = vmatprep.subr.mxu0 0.0
      %383 = vmatpush2.msra.mxu0 0.0
      %384 = vmatprep.subr.mxu0 0.0
      %385 = vmatpush2.msra.mxu0 0.0
      %386 = vmatprep.subr.mxu0 0.0
      %387 = vmatpush2.msra.mxu0 0.0
      %388 = vmatprep.subr.mxu0 0.0
      %389 = vmatpush2.msra.mxu0 0.0
      %390 = vmatprep.subr.mxu0 0.0
      %391 = vmatpush2.msra.mxu0 0.0
      %392 = vmatprep.subr.mxu0 0.0
      %393 = vmatpush2.msra.mxu0 0.0
      %394 = vmatprep.subr.mxu0 0.0
      %395 = vmatpush2.msra.mxu0 0.0
      %396 = vmatprep.mubr.f32.mxu0 0.0
      %397 = vmatmul.mubr.f32.gmra.mxu0 %v327
      %v398 = vpop.f32.mrf.mxu0
      %v399 = vadd.f32 0.0, %v398
      %v400 = vpop.f32.mrf.mxu0
      %401 = vmatprep.mubr.f32.mxu0 0.0
      %402 = vmatmul.mubr.f32.gmra.mxu0 %v330
      %v403 = vpop.f32.mrf.mxu0
      %v404 = vadd.f32 0.0, %v403
      %v405 = vpop.f32.mrf.mxu0
      %406 = vdwg.mxu0
      %v407 = vmax.f32 %v315, %v399
      %v408 = vmax.f32 %v320, %v404
      %s409 = scalar_lea.vmem %s224, 32
      %v410 = vld [vmem:[%s409] sm:$0xff]
      %v411 = vld [vmem:[%s409 + $0x8] sm:$0xff]
      %v413 = vsel %vm237, %v410, 0
      %v416 = vsel %vm237, %v411, 0
      %418 = vmatprep.subr.mxu0 0.0
      %419 = vmatpush1.msra.mxu0 0.0
      %420 = vmatprep.subr.mxu0 0.0
      %421 = vmatpush1.msra.mxu0 0.0
      %422 = vmatprep.subr.mxu0 0.0
      %423 = vmatpush1.msra.mxu0 0.0
      %424 = vmatprep.subr.mxu0 0.0
      %425 = vmatpush1.msra.mxu0 0.0
      %426 = vmatprep.subr.mxu0 0.0
      %427 = vmatpush1.msra.mxu0 0.0
      %428 = vmatprep.subr.mxu0 0.0
      %429 = vmatpush1.msra.mxu0 0.0
      %430 = vmatprep.subr.mxu0 0.0
      %431 = vmatpush1.msra.mxu0 0.0
      %432 = vmatprep.subr.mxu0 0.0
      %433 = vmatpush1.msra.mxu0 0.0
      %434 = vmatprep.subr.mxu0 0.0
      %435 = vmatpush1.msra.mxu0 0.0
      %436 = vmatprep.subr.mxu0 0.0
      %437 = vmatpush1.msra.mxu0 0.0
      %438 = vmatprep.subr.mxu0 0.0
      %439 = vmatpush1.msra.mxu0 0.0
      %440 = vmatprep.subr.mxu0 0.0
      %441 = vmatpush1.msra.mxu0 0.0
      %442 = vmatprep.subr.mxu0 0.0
      %443 = vmatpush1.msra.mxu0 0.0
      %444 = vmatprep.subr.mxu0 0.0
      %445 = vmatpush1.msra.mxu0 0.0
      %446 = vmatprep.subr.mxu0 0.0
      %447 = vmatpush1.msra.mxu0 0.0
      %448 = vmatprep.subr.mxu0 0.0
      %449 = vmatpush1.msra.mxu0 %v246
      %450 = vmatprep.subr.mxu0 0.0
      %451 = vmatpush2.msra.mxu0 0.0
      %452 = vmatprep.subr.mxu0 0.0
      %453 = vmatpush2.msra.mxu0 0.0
      %454 = vmatprep.subr.mxu0 0.0
      %455 = vmatpush2.msra.mxu0 0.0
      %456 = vmatprep.subr.mxu0 0.0
      %457 = vmatpush2.msra.mxu0 0.0
      %458 = vmatprep.subr.mxu0 0.0
      %459 = vmatpush2.msra.mxu0 0.0
      %460 = vmatprep.subr.mxu0 0.0
      %461 = vmatpush2.msra.mxu0 0.0
      %462 = vmatprep.subr.mxu0 0.0
      %463 = vmatpush2.msra.mxu0 0.0
      %464 = vmatprep.subr.mxu0 0.0
      %465 = vmatpush2.msra.mxu0 0.0
      %466 = vmatprep.subr.mxu0 0.0
      %467 = vmatpush2.msra.mxu0 0.0
      %468 = vmatprep.subr.mxu0 0.0
      %469 = vmatpush2.msra.mxu0 0.0
      %470 = vmatprep.subr.mxu0 0.0
      %471 = vmatpush2.msra.mxu0 0.0
      %472 = vmatprep.subr.mxu0 0.0
      %473 = vmatpush2.msra.mxu0 0.0
      %474 = vmatprep.subr.mxu0 0.0
      %475 = vmatpush2.msra.mxu0 0.0
      %476 = vmatprep.subr.mxu0 0.0
      %477 = vmatpush2.msra.mxu0 0.0
      %478 = vmatprep.subr.mxu0 0.0
      %479 = vmatpush2.msra.mxu0 0.0
      %480 = vmatprep.subr.mxu0 0.0
      %481 = vmatpush2.msra.mxu0 0.0
      %482 = vmatprep.mubr.f32.mxu0 0.0
      %483 = vmatmul.mubr.f32.gmra.mxu0 %v413
      %v484 = vpop.f32.mrf.mxu0
      %v485 = vadd.f32 0.0, %v484
      %v486 = vpop.f32.mrf.mxu0
      %487 = vmatprep.mubr.f32.mxu0 0.0
      %488 = vmatmul.mubr.f32.gmra.mxu0 %v416
      %v489 = vpop.f32.mrf.mxu0
      %v490 = vadd.f32 0.0, %v489
      %v491 = vpop.f32.mrf.mxu0
      %492 = vdwg.mxu0
      %v493 = vmax.f32 %v407, %v485
      %v494 = vmax.f32 %v408, %v490
      %s495 = scalar_lea.vmem %s224, 48
      %v496 = vld [vmem:[%s495] sm:$0xff]
      %v497 = vld [vmem:[%s495 + $0x8] sm:$0xff]
      %v499 = vsel %vm237, %v496, 0
      %v502 = vsel %vm237, %v497, 0
      %504 = vmatprep.subr.mxu0 0.0
      %505 = vmatpush1.msra.mxu0 0.0
      %506 = vmatprep.subr.mxu0 0.0
      %507 = vmatpush1.msra.mxu0 0.0
      %508 = vmatprep.subr.mxu0 0.0
      %509 = vmatpush1.msra.mxu0 0.0
      %510 = vmatprep.subr.mxu0 0.0
      %511 = vmatpush1.msra.mxu0 0.0
      %512 = vmatprep.subr.mxu0 0.0
      %513 = vmatpush1.msra.mxu0 0.0
      %514 = vmatprep.subr.mxu0 0.0
      %515 = vmatpush1.msra.mxu0 0.0
      %516 = vmatprep.subr.mxu0 0.0
      %517 = vmatpush1.msra.mxu0 0.0
      %518 = vmatprep.subr.mxu0 0.0
      %519 = vmatpush1.msra.mxu0 0.0
      %520 = vmatprep.subr.mxu0 0.0
      %521 = vmatpush1.msra.mxu0 0.0
      %522 = vmatprep.subr.mxu0 0.0
      %523 = vmatpush1.msra.mxu0 0.0
      %524 = vmatprep.subr.mxu0 0.0
      %525 = vmatpush1.msra.mxu0 0.0
      %526 = vmatprep.subr.mxu0 0.0
      %527 = vmatpush1.msra.mxu0 0.0
      %528 = vmatprep.subr.mxu0 0.0
      %529 = vmatpush1.msra.mxu0 0.0
      %530 = vmatprep.subr.mxu0 0.0
      %531 = vmatpush1.msra.mxu0 0.0
      %532 = vmatprep.subr.mxu0 0.0
      %533 = vmatpush1.msra.mxu0 0.0
      %534 = vmatprep.subr.mxu0 0.0
      %535 = vmatpush1.msra.mxu0 %v246
      %536 = vmatprep.subr.mxu0 0.0
      %537 = vmatpush2.msra.mxu0 0.0
      %538 = vmatprep.subr.mxu0 0.0
      %539 = vmatpush2.msra.mxu0 0.0
      %540 = vmatprep.subr.mxu0 0.0
      %541 = vmatpush2.msra.mxu0 0.0
      %542 = vmatprep.subr.mxu0 0.0
      %543 = vmatpush2.msra.mxu0 0.0
      %544 = vmatprep.subr.mxu0 0.0
      %545 = vmatpush2.msra.mxu0 0.0
      %546 = vmatprep.subr.mxu0 0.0
      %547 = vmatpush2.msra.mxu0 0.0
      %548 = vmatprep.subr.mxu0 0.0
      %549 = vmatpush2.msra.mxu0 0.0
      %550 = vmatprep.subr.mxu0 0.0
      %551 = vmatpush2.msra.mxu0 0.0
      %552 = vmatprep.subr.mxu0 0.0
      %553 = vmatpush2.msra.mxu0 0.0
      %554 = vmatprep.subr.mxu0 0.0
      %555 = vmatpush2.msra.mxu0 0.0
      %556 = vmatprep.subr.mxu0 0.0
      %557 = vmatpush2.msra.mxu0 0.0
      %558 = vmatprep.subr.mxu0 0.0
      %559 = vmatpush2.msra.mxu0 0.0
      %560 = vmatprep.subr.mxu0 0.0
      %561 = vmatpush2.msra.mxu0 0.0
      %562 = vmatprep.subr.mxu0 0.0
      %563 = vmatpush2.msra.mxu0 0.0
      %564 = vmatprep.subr.mxu0 0.0
      %565 = vmatpush2.msra.mxu0 0.0
      %566 = vmatprep.subr.mxu0 0.0
      %567 = vmatpush2.msra.mxu0 0.0
      %568 = vmatprep.mubr.f32.mxu0 0.0
      %569 = vmatmul.mubr.f32.gmra.mxu0 %v499
      %v570 = vpop.f32.mrf.mxu0
      %v571 = vadd.f32 0.0, %v570
      %v572 = vpop.f32.mrf.mxu0
      %573 = vmatprep.mubr.f32.mxu0 0.0
      %574 = vmatmul.mubr.f32.gmra.mxu0 %v502
      %v575 = vpop.f32.mrf.mxu0
      %v576 = vadd.f32 0.0, %v575
      %v577 = vpop.f32.mrf.mxu0
      %578 = vdwg.mxu0
      %v579 = vmax.f32 %v493, %v571
      %v580 = vmax.f32 %v494, %v576
      %s581 = scalar_lea.vmem %s224, 64
      %v582 = vld [vmem:[%s581] sm:$0xff]
      %v583 = vld [vmem:[%s581 + $0x8] sm:$0xff]
      %v585 = vsel %vm237, %v582, 0
      %v588 = vsel %vm237, %v583, 0
      %590 = vmatprep.subr.mxu0 0.0
      %591 = vmatpush1.msra.mxu0 0.0
      %592 = vmatprep.subr.mxu0 0.0
      %593 = vmatpush1.msra.mxu0 0.0
      %594 = vmatprep.subr.mxu0 0.0
      %595 = vmatpush1.msra.mxu0 0.0
      %596 = vmatprep.subr.mxu0 0.0
      %597 = vmatpush1.msra.mxu0 0.0
      %598 = vmatprep.subr.mxu0 0.0
      %599 = vmatpush1.msra.mxu0 0.0
      %600 = vmatprep.subr.mxu0 0.0
      %601 = vmatpush1.msra.mxu0 0.0
      %602 = vmatprep.subr.mxu0 0.0
      %603 = vmatpush1.msra.mxu0 0.0
      %604 = vmatprep.subr.mxu0 0.0
      %605 = vmatpush1.msra.mxu0 0.0
      %606 = vmatprep.subr.mxu0 0.0
      %607 = vmatpush1.msra.mxu0 0.0
      %608 = vmatprep.subr.mxu0 0.0
      %609 = vmatpush1.msra.mxu0 0.0
      %610 = vmatprep.subr.mxu0 0.0
      %611 = vmatpush1.msra.mxu0 0.0
      %612 = vmatprep.subr.mxu0 0.0
      %613 = vmatpush1.msra.mxu0 0.0
      %614 = vmatprep.subr.mxu0 0.0
      %615 = vmatpush1.msra.mxu0 0.0
      %616 = vmatprep.subr.mxu0 0.0
      %617 = vmatpush1.msra.mxu0 0.0
      %618 = vmatprep.subr.mxu0 0.0
      %619 = vmatpush1.msra.mxu0 0.0
      %620 = vmatprep.subr.mxu0 0.0
      %621 = vmatpush1.msra.mxu0 %v246
      %622 = vmatprep.subr.mxu0 0.0
      %623 = vmatpush2.msra.mxu0 0.0
      %624 = vmatprep.subr.mxu0 0.0
      %625 = vmatpush2.msra.mxu0 0.0
      %626 = vmatprep.subr.mxu0 0.0
      %627 = vmatpush2.msra.mxu0 0.0
      %628 = vmatprep.subr.mxu0 0.0
      %629 = vmatpush2.msra.mxu0 0.0
      %630 = vmatprep.subr.mxu0 0.0
      %631 = vmatpush2.msra.mxu0 0.0
      %632 = vmatprep.subr.mxu0 0.0
      %633 = vmatpush2.msra.mxu0 0.0
      %634 = vmatprep.subr.mxu0 0.0
      %635 = vmatpush2.msra.mxu0 0.0
      %636 = vmatprep.subr.mxu0 0.0
      %637 = vmatpush2.msra.mxu0 0.0
      %638 = vmatprep.subr.mxu0 0.0
      %639 = vmatpush2.msra.mxu0 0.0
      %640 = vmatprep.subr.mxu0 0.0
      %641 = vmatpush2.msra.mxu0 0.0
      %642 = vmatprep.subr.mxu0 0.0
      %643 = vmatpush2.msra.mxu0 0.0
      %644 = vmatprep.subr.mxu0 0.0
      %645 = vmatpush2.msra.mxu0 0.0
      %646 = vmatprep.subr.mxu0 0.0
      %647 = vmatpush2.msra.mxu0 0.0
      %648 = vmatprep.subr.mxu0 0.0
      %649 = vmatpush2.msra.mxu0 0.0
      %650 = vmatprep.subr.mxu0 0.0
      %651 = vmatpush2.msra.mxu0 0.0
      %652 = vmatprep.subr.mxu0 0.0
      %653 = vmatpush2.msra.mxu0 0.0
      %654 = vmatprep.mubr.f32.mxu0 0.0
      %655 = vmatmul.mubr.f32.gmra.mxu0 %v585
      %v656 = vpop.f32.mrf.mxu0
      %v657 = vadd.f32 0.0, %v656
      %v658 = vpop.f32.mrf.mxu0
      %659 = vmatprep.mubr.f32.mxu0 0.0
      %660 = vmatmul.mubr.f32.gmra.mxu0 %v588
      %v661 = vpop.f32.mrf.mxu0
      %v662 = vadd.f32 0.0, %v661
      %v663 = vpop.f32.mrf.mxu0
      %664 = vdwg.mxu0
      %v665 = vmax.f32 %v579, %v657
      %v666 = vmax.f32 %v580, %v662
      %s667 = scalar_lea.vmem %s224, 80
      %v668 = vld [vmem:[%s667] sm:$0xff]
      %v669 = vld [vmem:[%s667 + $0x8] sm:$0xff]
      %v671 = vsel %vm237, %v668, 0
      %v674 = vsel %vm237, %v669, 0
      %676 = vmatprep.subr.mxu0 0.0
      %677 = vmatpush1.msra.mxu0 0.0
      %678 = vmatprep.subr.mxu0 0.0
      %679 = vmatpush1.msra.mxu0 0.0
      %680 = vmatprep.subr.mxu0 0.0
      %681 = vmatpush1.msra.mxu0 0.0
      %682 = vmatprep.subr.mxu0 0.0
      %683 = vmatpush1.msra.mxu0 0.0
      %684 = vmatprep.subr.mxu0 0.0
      %685 = vmatpush1.msra.mxu0 0.0
      %686 = vmatprep.subr.mxu0 0.0
      %687 = vmatpush1.msra.mxu0 0.0
      %688 = vmatprep.subr.mxu0 0.0
      %689 = vmatpush1.msra.mxu0 0.0
      %690 = vmatprep.subr.mxu0 0.0
      %691 = vmatpush1.msra.mxu0 0.0
      %692 = vmatprep.subr.mxu0 0.0
      %693 = vmatpush1.msra.mxu0 0.0
      %694 = vmatprep.subr.mxu0 0.0
      %695 = vmatpush1.msra.mxu0 0.0
      %696 = vmatprep.subr.mxu0 0.0
      %697 = vmatpush1.msra.mxu0 0.0
      %698 = vmatprep.subr.mxu0 0.0
      %699 = vmatpush1.msra.mxu0 0.0
      %700 = vmatprep.subr.mxu0 0.0
      %701 = vmatpush1.msra.mxu0 0.0
      %702 = vmatprep.subr.mxu0 0.0
      %703 = vmatpush1.msra.mxu0 0.0
      %704 = vmatprep.subr.mxu0 0.0
      %705 = vmatpush1.msra.mxu0 0.0
      %706 = vmatprep.subr.mxu0 0.0
      %707 = vmatpush1.msra.mxu0 %v246
      %708 = vmatprep.subr.mxu0 0.0
      %709 = vmatpush2.msra.mxu0 0.0
      %710 = vmatprep.subr.mxu0 0.0
      %711 = vmatpush2.msra.mxu0 0.0
      %712 = vmatprep.subr.mxu0 0.0
      %713 = vmatpush2.msra.mxu0 0.0
      %714 = vmatprep.subr.mxu0 0.0
      %715 = vmatpush2.msra.mxu0 0.0
      %716 = vmatprep.subr.mxu0 0.0
      %717 = vmatpush2.msra.mxu0 0.0
      %718 = vmatprep.subr.mxu0 0.0
      %719 = vmatpush2.msra.mxu0 0.0
      %720 = vmatprep.subr.mxu0 0.0
      %721 = vmatpush2.msra.mxu0 0.0
      %722 = vmatprep.subr.mxu0 0.0
      %723 = vmatpush2.msra.mxu0 0.0
      %724 = vmatprep.subr.mxu0 0.0
      %725 = vmatpush2.msra.mxu0 0.0
      %726 = vmatprep.subr.mxu0 0.0
      %727 = vmatpush2.msra.mxu0 0.0
      %728 = vmatprep.subr.mxu0 0.0
      %729 = vmatpush2.msra.mxu0 0.0
      %730 = vmatprep.subr.mxu0 0.0
      %731 = vmatpush2.msra.mxu0 0.0
      %732 = vmatprep.subr.mxu0 0.0
      %733 = vmatpush2.msra.mxu0 0.0
      %734 = vmatprep.subr.mxu0 0.0
      %735 = vmatpush2.msra.mxu0 0.0
      %736 = vmatprep.subr.mxu0 0.0
      %737 = vmatpush2.msra.mxu0 0.0
      %738 = vmatprep.subr.mxu0 0.0
      %739 = vmatpush2.msra.mxu0 0.0
      %740 = vmatprep.mubr.f32.mxu0 0.0
      %741 = vmatmul.mubr.f32.gmra.mxu0 %v671
      %v742 = vpop.f32.mrf.mxu0
      %v743 = vadd.f32 0.0, %v742
      %v744 = vpop.f32.mrf.mxu0
      %745 = vmatprep.mubr.f32.mxu0 0.0
      %746 = vmatmul.mubr.f32.gmra.mxu0 %v674
      %v747 = vpop.f32.mrf.mxu0
      %v748 = vadd.f32 0.0, %v747
      %v749 = vpop.f32.mrf.mxu0
      %750 = vdwg.mxu0
      %v751 = vmax.f32 %v665, %v743
      %v752 = vmax.f32 %v666, %v748
      %s753 = scalar_lea.vmem %s224, 96
      %v754 = vld [vmem:[%s753] sm:$0xff]
      %v755 = vld [vmem:[%s753 + $0x8] sm:$0xff]
      %v757 = vsel %vm237, %v754, 0
      %v760 = vsel %vm237, %v755, 0
      %762 = vmatprep.subr.mxu0 0.0
      %763 = vmatpush1.msra.mxu0 0.0
      %764 = vmatprep.subr.mxu0 0.0
      %765 = vmatpush1.msra.mxu0 0.0
      %766 = vmatprep.subr.mxu0 0.0
      %767 = vmatpush1.msra.mxu0 0.0
      %768 = vmatprep.subr.mxu0 0.0
      %769 = vmatpush1.msra.mxu0 0.0
      %770 = vmatprep.subr.mxu0 0.0
      %771 = vmatpush1.msra.mxu0 0.0
      %772 = vmatprep.subr.mxu0 0.0
      %773 = vmatpush1.msra.mxu0 0.0
      %774 = vmatprep.subr.mxu0 0.0
      %775 = vmatpush1.msra.mxu0 0.0
      %776 = vmatprep.subr.mxu0 0.0
      %777 = vmatpush1.msra.mxu0 0.0
      %778 = vmatprep.subr.mxu0 0.0
      %779 = vmatpush1.msra.mxu0 0.0
      %780 = vmatprep.subr.mxu0 0.0
      %781 = vmatpush1.msra.mxu0 0.0
      %782 = vmatprep.subr.mxu0 0.0
      %783 = vmatpush1.msra.mxu0 0.0
      %784 = vmatprep.subr.mxu0 0.0
      %785 = vmatpush1.msra.mxu0 0.0
      %786 = vmatprep.subr.mxu0 0.0
      %787 = vmatpush1.msra.mxu0 0.0
      %788 = vmatprep.subr.mxu0 0.0
      %789 = vmatpush1.msra.mxu0 0.0
      %790 = vmatprep.subr.mxu0 0.0
      %791 = vmatpush1.msra.mxu0 0.0
      %792 = vmatprep.subr.mxu0 0.0
      %793 = vmatpush1.msra.mxu0 %v246
      %794 = vmatprep.subr.mxu0 0.0
      %795 = vmatpush2.msra.mxu0 0.0
      %796 = vmatprep.subr.mxu0 0.0
      %797 = vmatpush2.msra.mxu0 0.0
      %798 = vmatprep.subr.mxu0 0.0
      %799 = vmatpush2.msra.mxu0 0.0
      %800 = vmatprep.subr.mxu0 0.0
      %801 = vmatpush2.msra.mxu0 0.0
      %802 = vmatprep.subr.mxu0 0.0
      %803 = vmatpush2.msra.mxu0 0.0
      %804 = vmatprep.subr.mxu0 0.0
      %805 = vmatpush2.msra.mxu0 0.0
      %806 = vmatprep.subr.mxu0 0.0
      %807 = vmatpush2.msra.mxu0 0.0
      %808 = vmatprep.subr.mxu0 0.0
      %809 = vmatpush2.msra.mxu0 0.0
      %810 = vmatprep.subr.mxu0 0.0
      %811 = vmatpush2.msra.mxu0 0.0
      %812 = vmatprep.subr.mxu0 0.0
      %813 = vmatpush2.msra.mxu0 0.0
      %814 = vmatprep.subr.mxu0 0.0
      %815 = vmatpush2.msra.mxu0 0.0
      %816 = vmatprep.subr.mxu0 0.0
      %817 = vmatpush2.msra.mxu0 0.0
      %818 = vmatprep.subr.mxu0 0.0
      %819 = vmatpush2.msra.mxu0 0.0
      %820 = vmatprep.subr.mxu0 0.0
      %821 = vmatpush2.msra.mxu0 0.0
      %822 = vmatprep.subr.mxu0 0.0
      %823 = vmatpush2.msra.mxu0 0.0
      %824 = vmatprep.subr.mxu0 0.0
      %825 = vmatpush2.msra.mxu0 0.0
      %826 = vmatprep.mubr.f32.mxu0 0.0
      %827 = vmatmul.mubr.f32.gmra.mxu0 %v757
      %v828 = vpop.f32.mrf.mxu0
      %v829 = vadd.f32 0.0, %v828
      %v830 = vpop.f32.mrf.mxu0
      %831 = vmatprep.mubr.f32.mxu0 0.0
      %832 = vmatmul.mubr.f32.gmra.mxu0 %v760
      %v833 = vpop.f32.mrf.mxu0
      %v834 = vadd.f32 0.0, %v833
      %v835 = vpop.f32.mrf.mxu0
      %836 = vdwg.mxu0
      %v837 = vmax.f32 %v751, %v829
      %v838 = vmax.f32 %v752, %v834
      %s839 = scalar_lea.vmem %s224, 112
      %v840 = vld [vmem:[%s839] sm:$0xff]
      %v841 = vld [vmem:[%s839 + $0x8] sm:$0xff]
      %v843 = vsel %vm237, %v840, 0
      %v846 = vsel %vm237, %v841, 0
      %848 = vmatprep.subr.mxu0 0.0
      %849 = vmatpush1.msra.mxu0 0.0
      %850 = vmatprep.subr.mxu0 0.0
      %851 = vmatpush1.msra.mxu0 0.0
      %852 = vmatprep.subr.mxu0 0.0
      %853 = vmatpush1.msra.mxu0 0.0
      %854 = vmatprep.subr.mxu0 0.0
      %855 = vmatpush1.msra.mxu0 0.0
      %856 = vmatprep.subr.mxu0 0.0
      %857 = vmatpush1.msra.mxu0 0.0
      %858 = vmatprep.subr.mxu0 0.0
      %859 = vmatpush1.msra.mxu0 0.0
      %860 = vmatprep.subr.mxu0 0.0
      %861 = vmatpush1.msra.mxu0 0.0
      %862 = vmatprep.subr.mxu0 0.0
      %863 = vmatpush1.msra.mxu0 0.0
      %864 = vmatprep.subr.mxu0 0.0
      %865 = vmatpush1.msra.mxu0 0.0
      %866 = vmatprep.subr.mxu0 0.0
      %867 = vmatpush1.msra.mxu0 0.0
      %868 = vmatprep.subr.mxu0 0.0
      %869 = vmatpush1.msra.mxu0 0.0
      %870 = vmatprep.subr.mxu0 0.0
      %871 = vmatpush1.msra.mxu0 0.0
      %872 = vmatprep.subr.mxu0 0.0
      %873 = vmatpush1.msra.mxu0 0.0
      %874 = vmatprep.subr.mxu0 0.0
      %875 = vmatpush1.msra.mxu0 0.0
      %876 = vmatprep.subr.mxu0 0.0
      %877 = vmatpush1.msra.mxu0 0.0
      %878 = vmatprep.subr.mxu0 0.0
      %879 = vmatpush1.msra.mxu0 %v246
      %880 = vmatprep.subr.mxu0 0.0
      %881 = vmatpush2.msra.mxu0 0.0
      %882 = vmatprep.subr.mxu0 0.0
      %883 = vmatpush2.msra.mxu0 0.0
      %884 = vmatprep.subr.mxu0 0.0
      %885 = vmatpush2.msra.mxu0 0.0
      %886 = vmatprep.subr.mxu0 0.0
      %887 = vmatpush2.msra.mxu0 0.0
      %888 = vmatprep.subr.mxu0 0.0
      %889 = vmatpush2.msra.mxu0 0.0
      %890 = vmatprep.subr.mxu0 0.0
      %891 = vmatpush2.msra.mxu0 0.0
      %892 = vmatprep.subr.mxu0 0.0
      %893 = vmatpush2.msra.mxu0 0.0
      %894 = vmatprep.subr.mxu0 0.0
      %895 = vmatpush2.msra.mxu0 0.0
      %896 = vmatprep.subr.mxu0 0.0
      %897 = vmatpush2.msra.mxu0 0.0
      %898 = vmatprep.subr.mxu0 0.0
      %899 = vmatpush2.msra.mxu0 0.0
      %900 = vmatprep.subr.mxu0 0.0
      %901 = vmatpush2.msra.mxu0 0.0
      %902 = vmatprep.subr.mxu0 0.0
      %903 = vmatpush2.msra.mxu0 0.0
      %904 = vmatprep.subr.mxu0 0.0
      %905 = vmatpush2.msra.mxu0 0.0
      %906 = vmatprep.subr.mxu0 0.0
      %907 = vmatpush2.msra.mxu0 0.0
      %908 = vmatprep.subr.mxu0 0.0
      %909 = vmatpush2.msra.mxu0 0.0
      %910 = vmatprep.subr.mxu0 0.0
      %911 = vmatpush2.msra.mxu0 0.0
      %912 = vmatprep.mubr.f32.mxu0 0.0
      %913 = vmatmul.mubr.f32.gmra.mxu0 %v843
      %v914 = vpop.f32.mrf.mxu0
      %v915 = vadd.f32 0.0, %v914
      %v916 = vpop.f32.mrf.mxu0
      %917 = vmatprep.mubr.f32.mxu0 0.0
      %918 = vmatmul.mubr.f32.gmra.mxu0 %v846
      %v919 = vpop.f32.mrf.mxu0
      %v920 = vadd.f32 0.0, %v919
      %v921 = vpop.f32.mrf.mxu0
      %922 = vdwg.mxu0
      %v923 = vmax.f32 %v837, %v915
      %v924 = vmax.f32 %v838, %v920
      %v925 = vld [vmem:[%s2] sm:$0x7f]
      %v927 = vsel %vm244, %v925, 0
      %929 = vmatprep.subr.mxu0 0.0
      %930 = vmatpush1.msra.mxu0 0.0
      %931 = vmatprep.subr.mxu0 0.0
      %932 = vmatpush1.msra.mxu0 0.0
      %933 = vmatprep.subr.mxu0 0.0
      %934 = vmatpush1.msra.mxu0 0.0
      %935 = vmatprep.subr.mxu0 0.0
      %936 = vmatpush1.msra.mxu0 0.0
      %937 = vmatprep.subr.mxu0 0.0
      %938 = vmatpush1.msra.mxu0 0.0
      %939 = vmatprep.subr.mxu0 0.0
      %940 = vmatpush1.msra.mxu0 0.0
      %941 = vmatprep.subr.mxu0 0.0
      %942 = vmatpush1.msra.mxu0 0.0
      %943 = vmatprep.subr.mxu0 0.0
      %944 = vmatpush1.msra.mxu0 0.0
      %945 = vmatprep.subr.mxu0 0.0
      %946 = vmatpush1.msra.mxu0 0.0
      %947 = vmatprep.subr.mxu0 0.0
      %948 = vmatpush1.msra.mxu0 0.0
      %949 = vmatprep.subr.mxu0 0.0
      %950 = vmatpush1.msra.mxu0 0.0
      %951 = vmatprep.subr.mxu0 0.0
      %952 = vmatpush1.msra.mxu0 0.0
      %953 = vmatprep.subr.mxu0 0.0
      %954 = vmatpush1.msra.mxu0 0.0
      %955 = vmatprep.subr.mxu0 0.0
      %956 = vmatpush1.msra.mxu0 0.0
      %957 = vmatprep.subr.mxu0 0.0
      %958 = vmatpush1.msra.mxu0 0.0
      %959 = vmatprep.subr.mxu0 0.0
      %960 = vmatpush1.msra.mxu0 %v927
      %961 = vmatprep.subr.mxu0 0.0
      %962 = vmatpush2.msra.mxu0 0.0
      %963 = vmatprep.subr.mxu0 0.0
      %964 = vmatpush2.msra.mxu0 0.0
      %965 = vmatprep.subr.mxu0 0.0
      %966 = vmatpush2.msra.mxu0 0.0
      %967 = vmatprep.subr.mxu0 0.0
      %968 = vmatpush2.msra.mxu0 0.0
      %969 = vmatprep.subr.mxu0 0.0
      %970 = vmatpush2.msra.mxu0 0.0
      %971 = vmatprep.subr.mxu0 0.0
      %972 = vmatpush2.msra.mxu0 0.0
      %973 = vmatprep.subr.mxu0 0.0
      %974 = vmatpush2.msra.mxu0 0.0
      %975 = vmatprep.subr.mxu0 0.0
      %976 = vmatpush2.msra.mxu0 0.0
      %977 = vmatprep.subr.mxu0 0.0
      %978 = vmatpush2.msra.mxu0 0.0
      %979 = vmatprep.subr.mxu0 0.0
      %980 = vmatpush2.msra.mxu0 0.0
      %981 = vmatprep.subr.mxu0 0.0
      %982 = vmatpush2.msra.mxu0 0.0
      %983 = vmatprep.subr.mxu0 0.0
      %984 = vmatpush2.msra.mxu0 0.0
      %985 = vmatprep.subr.mxu0 0.0
      %986 = vmatpush2.msra.mxu0 0.0
      %987 = vmatprep.subr.mxu0 0.0
      %988 = vmatpush2.msra.mxu0 0.0
      %989 = vmatprep.subr.mxu0 0.0
      %990 = vmatpush2.msra.mxu0 0.0
      %991 = vmatprep.subr.mxu0 0.0
      %992 = vmatpush2.msra.mxu0 0.0
      %993 = vmatprep.mubr.f32.mxu0 0.0
      %994 = vmatmul.mubr.f32.gmra.mxu0 %v239
      %v995 = vpop.f32.mrf.mxu0
      %v996 = vadd.f32 0.0, %v995
      %v997 = vpop.f32.mrf.mxu0
      %998 = vmatprep.mubr.f32.mxu0 0.0
      %999 = vmatmul.mubr.f32.gmra.mxu0 %v242
      %v1000 = vpop.f32.mrf.mxu0
      %v1001 = vadd.f32 0.0, %v1000
      %v1002 = vpop.f32.mrf.mxu0
      %1003 = vdwg.mxu0
      %v1004 = vadd.f32 %v923, %v996
      %v1005 = vadd.f32 %v924, %v1001
      %v1006 = vld [vmem:[%s3] sm:$0x1]
      %v1008 = vlaneseq
      %v1009 = vshrl.u32 %v1008, 7
      %v1010 = vsub.s32 0, %v1009
      %v1011 = vrot.slane %v1006, %v1010
      %v1013 = vadd.f32 %v1004, %v1011
      %v1014 = vadd.f32 %v1005, %v1011
      %v1015 = vmax.f32 %v1013, 0.0
      %v1016 = vmax.f32 %v1014, 0.0
      %1017 = vxpose.xlu0.b32.start [1/16] %v1015, 128
      %1018 = vxpose.xlu0.b32.cont [2/16] %v1016, 128
      %1019 = vxpose.xlu0.b32.cont [3/16] 0.0, 128
      %1020 = vxpose.xlu0.b32.cont [4/16] 0.0, 128
      %1021 = vxpose.xlu0.b32.cont [5/16] 0.0, 128
      %1022 = vxpose.xlu0.b32.cont [6/16] 0.0, 128
      %1023 = vxpose.xlu0.b32.cont [7/16] 0.0, 128
      %1024 = vxpose.xlu0.b32.cont [8/16] 0.0, 128
      %1025 = vxpose.xlu0.b32.cont [9/16] 0.0, 128
      %1026 = vxpose.xlu0.b32.cont [10/16] 0.0, 128
      %1027 = vxpose.xlu0.b32.cont [11/16] 0.0, 128
      %1028 = vxpose.xlu0.b32.cont [12/16] 0.0, 128
      %1029 = vxpose.xlu0.b32.cont [13/16] 0.0, 128
      %1030 = vxpose.xlu0.b32.cont [14/16] 0.0, 128
      %1031 = vxpose.xlu0.b32.cont [15/16] 0.0, 128
      %1032 = vxpose.xlu0.b32.end [16/16] 0.0, 128
      %v1033 = vpop.trf.xlu0
      %v1034 = vpop.trf.xlu0
      %v1035 = vpop.trf.xlu0
      %v1036 = vpop.trf.xlu0
      %v1037 = vpop.trf.xlu0
      %v1038 = vpop.trf.xlu0
      %v1039 = vpop.trf.xlu0
      %v1040 = vpop.trf.xlu0
      %v1041 = vpop.trf.xlu0
      %v1042 = vpop.trf.xlu0
      %v1043 = vpop.trf.xlu0
      %v1044 = vpop.trf.xlu0
      %v1045 = vpop.trf.xlu0
      %v1046 = vpop.trf.xlu0
      %v1047 = vpop.trf.xlu0
      %v1048 = vpop.trf.xlu0
      %vm1049 = vcmask 130048
      %1050 = vst.msk [vmem:[%s233] sm:$0xff] %vm1049, %v1033
      %1051 = vst.msk [vmem:[%s233 + $0x8] sm:$0xff] %vm1049, %v1034
      %1052 = vst.msk [vmem:[%s233 + $0x10] sm:$0xff] %vm1049, %v1035
      %1053 = vst.msk [vmem:[%s233 + $0x18] sm:$0xff] %vm1049, %v1036
      %1054 = vst.msk [vmem:[%s233 + $0x20] sm:$0xff] %vm1049, %v1037
      %1055 = vst.msk [vmem:[%s233 + $0x28] sm:$0xff] %vm1049, %v1038
      %1056 = vst.msk [vmem:[%s233 + $0x30] sm:$0xff] %vm1049, %v1039
      %1057 = vst.msk [vmem:[%s233 + $0x38] sm:$0xff] %vm1049, %v1040
      %1058 = vst.msk [vmem:[%s233 + $0x40] sm:$0xff] %vm1049, %v1041
      %1059 = vst.msk [vmem:[%s233 + $0x48] sm:$0xff] %vm1049, %v1042
      %1060 = vst.msk [vmem:[%s233 + $0x50] sm:$0xff] %vm1049, %v1043
      %1061 = vst.msk [vmem:[%s233 + $0x58] sm:$0xff] %vm1049, %v1044
      %1062 = vst.msk [vmem:[%s233 + $0x60] sm:$0xff] %vm1049, %v1045
      %1063 = vst.msk [vmem:[%s233 + $0x68] sm:$0xff] %vm1049, %v1046
      %1064 = vst.msk [vmem:[%s233 + $0x70] sm:$0xff] %vm1049, %v1047
      %1065 = vst.msk [vmem:[%s233 + $0x78] sm:$0xff] %vm1049, %v1048
      %p1066 = scmp.lt.s32.totalorder %s19, 1
      %s1067 = scalar_select %p1066, %s19, 1
      %p1068 = scmp.lt.s32.totalorder %s20, 0
      %s1069 = scalar_select %p1068, %s20, 0
      %s1070 = smul.addr %s1067, 16
      %s1071 = sadd.s32 %s1069, %s1070
      %s1072 = smul.addr %s1071, 8
      %s1073 = scalar_lea.vmem %s4, %s1072
      // Predicated region
      $region37: #{local_aggregation_forward.1} parent=35 // pred_check
        %p1074 = pneg %p138
      $region38: #{local_aggregation_forward.1} parent=35 // pred_check_branch
        %1076 = sbr.rel (%p1074) target = $region40
      $region39: #{local_aggregation_forward.1} parent=35 // pred_region
        _
      $region40: #{local_aggregation_forward.1} parent=35 // pred_fallthru
        _
    $region36: #{local_aggregation_forward.1} parent=5 // pred_fallthru
      _
    %p1077 = scmp.le.s32.totalorder 2, %s10
    // Predicated region
    $region41: #{local_aggregation_forward.1} parent=5 // pred_check
      %p1078 = pneg %p1077
    $region42: #{local_aggregation_forward.1} parent=5 // pred_check_branch
      %1080 = sbr.rel (%p1078) target = $region44
    $region43: #{local_aggregation_forward.1} parent=5 // pred_region
      %s1081 = ssub.s32 %s10, 2
      // Predicated region
      $region45: #{local_aggregation_forward.1} parent=43 // pred_check
        %p1082 = pneg %p144
      $region46: #{local_aggregation_forward.1} parent=43 // pred_check_branch
        %1084 = sbr.rel (%p1082) target = $region48
      $region47: #{local_aggregation_forward.1} parent=43 // pred_region
        %p1085 = scmp.lt.s32.totalorder %s21, 1
        %s1086 = scalar_select %p1085, %s21, 1
        %p1087 = scmp.lt.s32.totalorder %s22, 0
        %s1088 = scalar_select %p1087, %s22, 0
        %s1089 = smul.addr %s1086, 16
        %s1090 = sadd.s32 %s1088, %s1089
        %s1091 = smul.addr %s1090, 8
        %s1092 = scalar_lea.vmem %s4, %s1091
      $region48: #{local_aggregation_forward.1} parent=43 // pred_fallthru
        _
    $region44: #{local_aggregation_forward.1} parent=5 // pred_fallthru
      _
  $region6: #{local_aggregation_forward.1} parent=0 // loop_footer
    %s14 = sadd.s32 1, %s10
  $region7: #{local_aggregation_forward.1} parent=0 // loop_footer_branch
    %9 = sbr.rel target = $region3
  $region8: #{local_aggregation_forward.1} parent=0 // loop_exit
    _

</llo_original>
